<compile_context>
chip_gen: v6e
topology: v6e:2x2x1
jax: 0.10.0
libtpu: 0.0.40
codegen_flags: <defaults>
</compile_context>

<pallas_src>
import jax
import jax.numpy as jnp
from jax.experimental import pallas as pl
from jax.experimental.pallas import tpu as pltpu

_TARGET_BLOCK_BYTES = 4 * 1024 * 1024      # ~4 MiB per block (good on v6e/v7x, safe on v5e)
_VMEM_LIMIT_BYTES = 32 * 1024 * 1024       # 2 in + 2 out buffers @4 MiB = 16 MiB + headroom
_SMALL_BYPASS_BYTES = 128 * 1024           # below this, XLA's fused add wins (launch overhead)
_SPLIT_THRESHOLD_BYTES = 512 * 1024        # above this, guarantee >= _MIN_PROGRAMS grid steps
_MIN_PROGRAMS = 4                          # lets v7x's 2 TensorCores both get work
_LANE_CANDIDATES = (2048, 1024, 512, 256, 128)


def _add_kernel(x_ref, o_ref):
    # Single vld of the tile (don't rely on Mosaic CSE of a duplicated read),
    # then a pure elementwise VPU add.
    v = x_ref[...]
    o_ref[...] = v + v


def _sublane_multiple(itemsize: int) -> int:
    # Native packed-tile sublane granularity per dtype width.
    return {4: 8, 2: 16, 1: 32}.get(itemsize, 8)


def _pick_tile_rows(rows: int, bytes_per_row: int, sub: int) -> int:
    """Choose the block row count.

    Returns either the full extent (single block) or a multiple of `sub`
    strictly smaller than `rows` (so the last two block dims satisfy the
    (8, 128) divisibility rule or are full-extent)."""
    total_bytes = rows * bytes_per_row
    if total_bytes <= _SPLIT_THRESHOLD_BYTES or rows <= 2 * sub:
        return rows  # single full-extent block, exempt from divisibility rule

    # Largest sublane-aligned row count keeping one block at ~_TARGET_BLOCK_BYTES.
    cap_rows = max(sub, (_TARGET_BLOCK_BYTES // bytes_per_row) // sub * sub)
    # Row count that yields at least _MIN_PROGRAMS grid steps.
    split_rows = max(sub, (pl.cdiv(rows, _MIN_PROGRAMS) // sub) * sub)

    tile_rows = min(cap_rows, split_rows)
    if tile_rows >= rows:
        return rows
    return tile_rows


def _launch_2d(x2d: jax.Array) -> jax.Array:
    rows, lanes = x2d.shape
    itemsize = jnp.dtype(x2d.dtype).itemsize
    sub = _sublane_multiple(itemsize)
    bytes_per_row = lanes * itemsize
    n = rows * lanes

    tile_rows = _pick_tile_rows(rows, bytes_per_row, sub)
    grid = (pl.cdiv(rows, tile_rows),)

    return pl.pallas_call(
        _add_kernel,
        out_shape=jax.ShapeDtypeStruct((rows, lanes), x2d.dtype),
        grid=grid,
        in_specs=[pl.BlockSpec((tile_rows, lanes), lambda i: (i, 0))],
        out_specs=pl.BlockSpec((tile_rows, lanes), lambda i: (i, 0)),
        compiler_params=pltpu.CompilerParams(
            dimension_semantics=("parallel",),
            vmem_limit_bytes=_VMEM_LIMIT_BYTES,
        ),
        cost_estimate=pl.CostEstimate(
            flops=n,
            bytes_accessed=2 * n * itemsize,
            transcendentals=0,
        ),
    )(x2d)


def my_model_add(x: jax.Array, *, min_pallas_bytes: int = _SMALL_BYPASS_BYTES) -> jax.Array:
    """myModelAdd.forward: returns x + x.

    Large 128-divisible inputs go through the Pallas streaming kernel; tiny or
    ragged inputs use XLA's fused elementwise add (already at HBM roofline).
    `min_pallas_bytes` can be lowered (e.g. to 0) to force the Pallas path."""
    shape = x.shape
    n = x.size
    if n == 0:
        return x + x  # nothing to do for empty arrays

    itemsize = jnp.dtype(x.dtype).itemsize

    # Small-size bypass: launch overhead dominates; XLA's fused add is optimal.
    if n * itemsize < min_pallas_bytes:
        return x + x

    # Fast path: n % 128 == 0 -> zero-copy reshape to the widest lane-dense slab.
    lanes = next((w for w in _LANE_CANDIDATES if n % w == 0), None)
    if lanes is not None:
        out2d = _launch_2d(x.reshape(n // lanes, lanes))
        return out2d.reshape(shape)

    # Ragged fallback (n % 128 != 0): plain XLA add is 1 HBM read + 1 write,
    # strictly better than any pad -> kernel -> slice scheme.
    return x + x
    # NOTE: input_output_aliases={0: 0} is intentionally not set: without the caller
    # donating x at the jit boundary XLA would insert a defensive copy (extra HBM pass).


if __name__ == "__main__":
    key = jax.random.PRNGKey(0)

    # Primary check: NCHW input, batch=2, channels=4, spatial=16x16, f32.
    # Default path (small-size bypass -> XLA fused add).
    x = jax.random.normal(key, (2, 4, 16, 16), dtype=jnp.float32)
    y = my_model_add(x)
    jax.block_until_ready(y)
    expected = x + x
    assert y.shape == expected.shape and y.dtype == expected.dtype
    assert jnp.allclose(y, expected), "mismatch vs reference x + x (f32, bypass)"

    # Same shape, forced through the Pallas kernel (exercise the kernel path).
    y_k = my_model_add(x, min_pallas_bytes=0)
    jax.block_until_ready(y_k)
    assert jnp.allclose(y_k, expected), "mismatch vs reference x + x (f32, Pallas)"

    # bf16 through the Pallas kernel (dtype-aware sublane path).
    xb = jax.random.normal(key, (2, 4, 16, 16), dtype=jnp.bfloat16)
    yb = my_model_add(xb, min_pallas_bytes=0)
    jax.block_until_ready(yb)
    assert jnp.allclose(yb.astype(jnp.float32), (xb + xb).astype(jnp.float32)), \
        "mismatch vs reference x + x (bf16, Pallas)"

    # Larger input (2 MiB): exercises the multi-program "parallel" split path.
    xl = jax.random.normal(key, (8, 8, 64, 64), dtype=jnp.float32)
    yl = my_model_add(xl)
    jax.block_until_ready(yl)
    assert jnp.allclose(yl, xl + xl), "mismatch vs reference x + x (large, Pallas)"

    # Ragged size (n % 128 != 0): XLA fallback path.
    xr = jax.random.normal(key, (3, 5, 7), dtype=jnp.float32)
    yr = my_model_add(xr)
    jax.block_until_ready(yr)
    assert jnp.allclose(yr, xr + xr), "mismatch vs reference x + x (ragged)"

    print("KERNEL_OK")
</pallas_src>

<mosaic_0001>
module attributes {stable_mosaic.version = 11 : i64} {
  func.func @_add_kernel(%arg0: i32, %arg1: memref<1x2048xf32, #tpu.memory_space<vmem>>, %arg2: memref<1x2048xf32, #tpu.memory_space<vmem>>) attributes {dimension_semantics = [#tpu.dimension_semantics<parallel>], iteration_bounds = array<i64: 1>, scalar_prefetch = 0 : i64, scratch_operands = 0 : i64, tpu.core_type = #tpu.core_type<tc>, window_params = [{transform_indices = @transform_0, window_bounds = array<i64: 1, 2048>}, {transform_indices = @transform_1, window_bounds = array<i64: 1, 2048>}]} {
    %c0 = arith.constant 0 : index
    %c0_0 = arith.constant 0 : index
    %0 = vector.load %arg1[%c0, %c0_0] : memref<1x2048xf32, #tpu.memory_space<vmem>>, vector<1x2048xf32>
    %1 = arith.addf %0, %0 : vector<1x2048xf32>
    %c0_1 = arith.constant 0 : index
    %c0_2 = arith.constant 0 : index
    %2 = vector.load %arg2[%c0_1, %c0_2] : memref<1x2048xf32, #tpu.memory_space<vmem>>, vector<1x2048xf32>
    tpu.vector_store %arg2[%c0_1, %c0_2], %1 {strides = array<i32>} : memref<1x2048xf32, #tpu.memory_space<vmem>>, vector<1x2048xf32>,
    return
  }
  func.func @transform_0(%arg0: i32) -> (i32, i32) {
    %c0_i32 = arith.constant 0 : i32
    %c0_i32_0 = arith.constant 0 : i32
    return %arg0, %c0_i32 : i32, i32
  }
  func.func @transform_1(%arg0: i32) -> (i32, i32) {
    %c0_i32 = arith.constant 0 : i32
    %c0_i32_0 = arith.constant 0 : i32
    return %arg0, %c0_i32 : i32, i32
  }
}

</mosaic_0001>

<llo_original>
// kernel: tpu_custom_call.1
$region0: #{tpu_custom_call.1}
  #allocation0 [shape = 'u32[]', space=smem, size = 0x4, offset = 0x4, fixed_abs, tag = 'smem constant byte address 0x4 - core index']
  #allocation1 [shape = 'u32[144,128]{1,0:T(1,128)}', space=vmem, size = 0x12000, scoped, tag = 'internal scratch']
  %s0 = inlined_call_operand.hbm [shape: f32[1,2048], index: 0, kind: input, shape index: {}]
  %s1 = inlined_call_operand.hbm [shape: f32[1,2048], index: 1, kind: output, shape index: {}]
  %s2 = sld [smem:[#allocation0]]
  $region18: #{tpu_custom_call.1} parent=0
    _
  %s4 = ssub.s32 1, %s2
  %s5 = scalar_select 0, %s4, %s2
  $region1: #{tpu_custom_call.1} parent=0
    #allocation2 [shape = 'u8[8192]{0}', space=vmem, size = 0x2000, scoped, tag = 'input window, operand 0, single buffered']
    #allocation3 [shape = 's32[1]{0}', space=sflag, size = 0x4, scoped, tag = 'scoped memory for tpu_custom_call.1']
    #allocation4 [shape = 's32[1]{0}', space=sflag, size = 0x4, scoped, tag = 'scoped memory for tpu_custom_call.1']
    #allocation5 [shape = 'u8[8192]{0}', space=vmem, size = 0x2000, scoped, tag = 'output window, operand 0, single buffered']
    %6 = vsyncpa [#allocation3], 0
    %7 = vsyncpa [#allocation4], 0
    // Predicated region
    $region2: #{tpu_custom_call.1} parent=1 // pred_check
      _
    $region3: #{tpu_custom_call.1} parent=1 // pred_check_branch
      %9 = sbr.rel (0) target = $region5
    $region4: #{tpu_custom_call.1} parent=1 // pred_region
      %s11 = ssub.s32 256, 256
      %12 = vsyncadd [#allocation3], %s11
      %s14 = sshll.u32 [#allocation2], 4
      %s15 = int_to_ptr.vmem [resolvable:$true] %s14
      %17 = dma.hbm_to_vmem [thread:$0]  %s0, 256, %s15, [#allocation3]
    $region5: #{tpu_custom_call.1} parent=1 // pred_fallthru
      _
    // Predicated region
    $region6: #{tpu_custom_call.1} parent=1 // pred_check
      _
    $region7: #{tpu_custom_call.1} parent=1 // pred_check_branch
      %19 = sbr.rel (0) target = $region9
    $region8: #{tpu_custom_call.1} parent=1 // pred_region
      %20 = dma.done [#allocation3], 256
    $region9: #{tpu_custom_call.1} parent=1 // pred_fallthru
      _
    %v21 = vld [vmem:[#allocation2] sm:$0xff]
    %v22 = vld [vmem:[#allocation2 + $0x8] sm:$0xff]
    %v23 = vadd.f32 %v21, %v21
    %v24 = vadd.f32 %v22, %v22
    %25 = vst [vmem:[#allocation5] sm:$0xff] %v23
    %26 = vst [vmem:[#allocation5 + $0x8] sm:$0xff] %v24
    // Predicated region
    $region10: #{tpu_custom_call.1} parent=1 // pred_check
      _
    $region11: #{tpu_custom_call.1} parent=1 // pred_check_branch
      %28 = sbr.rel (0) target = $region13
    $region12: #{tpu_custom_call.1} parent=1 // pred_region
      %s30 = ssub.s32 256, 256
      %31 = vsyncadd [#allocation4], %s30
      %s33 = sshll.u32 [#allocation5], 4
      %s34 = int_to_ptr.vmem [resolvable:$true] %s33
      %36 = dma.vmem_to_hbm [thread:$0]  %s34, 256, %s1, [#allocation4]
    $region13: #{tpu_custom_call.1} parent=1 // pred_fallthru
      _
    // Predicated region
    $region14: #{tpu_custom_call.1} parent=1 // pred_check
      _
    $region15: #{tpu_custom_call.1} parent=1 // pred_check_branch
      %38 = sbr.rel (0) target = $region17
    $region16: #{tpu_custom_call.1} parent=1 // pred_region
      %39 = dma.done [#allocation4], 256
    $region17: #{tpu_custom_call.1} parent=1 // pred_fallthru
      _
    %40 = vsyncpa [#allocation3], 1
    %41 = vsyncpa [#allocation4], 1

</llo_original>
